<compile_context>
chip_gen: v5e
topology: v5e:2x2
jax: 0.10.0
libtpu: 0.0.40
codegen_flags: <defaults>
</compile_context>

<pallas_src>
import functools
import math

import jax
import jax.numpy as jnp
from jax import lax
from jax.experimental import pallas as pl
from jax.experimental.pallas import tpu as pltpu

_LN_EPS = 1e-12                      # BERTLayerNorm variance_epsilon
_GELU_C = math.sqrt(2.0 / math.pi)   # tanh-approx GELU constant


def _ffn_kernel(x_ref, w1_ref, vecs_ref, w2_ref, b2_ref, out_ref, *, sub_rows):
    """One row-tile of: x @ W1 + b1 -> gelu -> LN(gamma,beta) -> @ W2 + b2.

    vecs_ref packs (b1, gamma, beta) as a (3, d_mid) f32 block.
    The tile is processed as independent sub-tiles (static unroll) so matmul
    work of one sub-tile can overlap elementwise work of another.
    """
    tm = out_ref.shape[0]
    n_sub = tm // sub_rows

    b1 = vecs_ref[0:1, :]        # (1, d_mid) f32
    gamma = vecs_ref[1:2, :]
    beta = vecs_ref[2:3, :]
    b2 = b2_ref[...]             # (1, d_out) f32
    w1 = w1_ref[...]             # (d_in, d_mid) bf16
    w2 = w2_ref[...]             # (d_mid, d_out) bf16

    for s in range(n_sub):
        r0 = s * sub_rows

        # ---- dense: x @ W1 + b1 (bf16 operands, f32 accumulation) ----
        h = jnp.dot(x_ref[r0:r0 + sub_rows, :], w1,
                    preferred_element_type=jnp.float32)
        h = h + b1

        # ---- GELU (tanh approximation -> EUP; exact erf has no EUP path) ----
        h = 0.5 * h * (1.0 + jnp.tanh(_GELU_C * (h + 0.044715 * (h * h * h))))

        # ---- single-pass BERTLayerNorm with gamma folded into the scale ----
        u = jnp.mean(h, axis=-1, keepdims=True)
        m2 = jnp.mean(h * h, axis=-1, keepdims=True)
        var = jnp.maximum(m2 - u * u, 0.0)          # guard tiny negative
        scale = gamma * lax.rsqrt(var + _LN_EPS)    # (sub_rows, d_mid)
        h = h * scale + (beta - u * scale)

        # ---- affine: h @ W2 + b2 (bf16 operands, f32 accumulation) ----
        y = jnp.dot(h.astype(w2.dtype), w2, preferred_element_type=jnp.float32)
        y = y + b2

        out_ref[r0:r0 + sub_rows, :] = y.astype(out_ref.dtype)


def _round_up(a, b):
    return ((a + b - 1) // b) * b


def _vmem_limit_bytes(tm, d_in, d_mid, d_out, x_bytes, w_bytes, out_bytes):
    weights = (d_in * d_mid + d_mid * d_out) * w_bytes   # single-buffered (Buffered(1))
    small = (8 * d_mid + 8 * d_out) * 4                  # padded bias/gamma/beta tiles
    acts = 2 * tm * d_in * x_bytes                       # double-buffered input tiles
    outs = 2 * tm * d_out * out_bytes                    # double-buffered output tiles
    inter = 2 * tm * d_mid * 4                           # live f32 intermediates
    est = int(1.5 * (weights + small + acts + outs + inter)) + (2 << 20)
    return min(max(est, 32 << 20), 64 << 20)             # stay within v7x physical VMEM


def prepare_ffn_params(params, compute_dtype=jnp.bfloat16):
    """One-time (per-parameter-set) transpose + cast, hoisted out of the
    per-forward path: weights end up in (in, out) layout and bf16."""
    w1, b1 = params["dense"]     # (intermediate, input), (intermediate,)
    w2, b2 = params["affine"]    # (output, intermediate), (output,)
    gamma, beta = params["ln"]   # (intermediate,), (intermediate,)
    return {
        "w1t": jnp.transpose(w1).astype(compute_dtype),            # (in, mid)
        "w2t": jnp.transpose(w2).astype(compute_dtype),            # (mid, out)
        "vecs": jnp.stack([b1, gamma, beta]).astype(jnp.float32),  # (3, mid)
        "b2": b2.reshape(1, -1).astype(jnp.float32),               # (1, out)
        "compute_dtype": compute_dtype,
    }


def bert_feedforward(hidden_states, prepared, *, block_rows=256):
    """hidden_states: (..., input_size); prepared = prepare_ffn_params(...)."""
    w1t, w2t = prepared["w1t"], prepared["w2t"]
    vecs, b2 = prepared["vecs"], prepared["b2"]
    compute_dtype = prepared["compute_dtype"]

    orig_shape = hidden_states.shape
    d_in, d_mid = w1t.shape
    d_out = w2t.shape[1]
    out_dtype = hidden_states.dtype

    n_rows = 1
    for d in orig_shape[:-1]:
        n_rows *= d
    x2 = hidden_states.reshape(n_rows, d_in).astype(compute_dtype)

    # Row tiling: multiple of 8 sublanes; no padding (Pallas clips the ragged
    # last block; rows are independent so clipped garbage never leaks).
    tm = min(block_rows, _round_up(n_rows, 8))
    if n_rows > 8 and pl.cdiv(n_rows, tm) < 2:
        # v7x has 2 TensorCores sharding the "parallel" axis: keep >= 2 steps.
        tm = max(8, _round_up(pl.cdiv(n_rows, 2), 8))
    grid = (pl.cdiv(n_rows, tm),)

    # Split each tile into 2 sub-tiles (when possible) for MXU/VPU overlap.
    n_sub = 2 if (tm >= 16 and tm % 16 == 0) else 1
    sub_rows = tm // n_sub

    def invariant(shape):
        return pl.BlockSpec(shape, lambda i: (0,) * len(shape),
                            pipeline_mode=pl.Buffered(1))

    vmem_limit = _vmem_limit_bytes(
        tm, d_in, d_mid, d_out,
        jnp.dtype(compute_dtype).itemsize,
        jnp.dtype(w1t.dtype).itemsize,
        jnp.dtype(out_dtype).itemsize)

    out = pl.pallas_call(
        functools.partial(_ffn_kernel, sub_rows=sub_rows),
        out_shape=jax.ShapeDtypeStruct((n_rows, d_out), out_dtype),
        grid_spec=pltpu.PrefetchScalarGridSpec(
            num_scalar_prefetch=0,
            grid=grid,
            in_specs=[
                pl.BlockSpec((tm, d_in), lambda i: (i, 0)),  # activations
                invariant((d_in, d_mid)),                    # W1^T (bf16)
                invariant((3, d_mid)),                       # b1 / gamma / beta
                invariant((d_mid, d_out)),                   # W2^T (bf16)
                invariant((1, d_out)),                       # b2
            ],
            out_specs=pl.BlockSpec((tm, d_out), lambda i: (i, 0)),
        ),
        compiler_params=pltpu.CompilerParams(
            dimension_semantics=("parallel",),
            vmem_limit_bytes=vmem_limit),
    )(x2, w1t, vecs, w2t, b2)

    return out.reshape(*orig_shape[:-1], d_out)


def init_params(key, input_size, intermediate_size, output_size,
                dtype=jnp.float32):
    """Deterministic synthetic params, PyTorch nn.Linear layout (out, in).

    The reference module applies BERTLayerNorm (sized hidden_size) to the
    intermediate activations, so hidden_size == intermediate_size here.
    """
    ks = jax.random.split(key, 4)

    def lin(k, d_out, d_in):
        kw, kb = jax.random.split(k)
        scale = 1.0 / math.sqrt(d_in)
        w = jax.random.uniform(kw, (d_out, d_in), dtype, -scale, scale)
        b = jax.random.uniform(kb, (d_out,), dtype, -scale, scale)
        return w, b

    return {
        "dense": lin(ks[0], intermediate_size, input_size),
        "affine": lin(ks[1], output_size, intermediate_size),
        "ln": (jnp.ones((intermediate_size,), dtype),
               jnp.zeros((intermediate_size,), dtype)),
    }


def _reference(x, params):
    """Pure-JAX f32 reference matching the PyTorch BertFeedForward.forward
    (exact erf GELU, two-pass LayerNorm)."""
    w1, b1 = params["dense"]
    w2, b2 = params["affine"]
    gamma, beta = params["ln"]
    h = x @ w1.T + b1
    h = h * 0.5 * (1.0 + jax.scipy.special.erf(h / math.sqrt(2.0)))
    u = h.mean(-1, keepdims=True)
    s = ((h - u) ** 2).mean(-1, keepdims=True)
    h = (h - u) / jnp.sqrt(s + _LN_EPS)
    h = gamma * h + beta
    return h @ w2.T + b2


if __name__ == "__main__":
    B, T = 2, 8
    INPUT, INTERMEDIATE, OUTPUT = 32, 128, 32

    root = jax.random.PRNGKey(0)
    kx, kp = jax.random.split(root)

    x = jax.random.normal(kx, (B, T, INPUT), jnp.float32)
    params = init_params(kp, INPUT, INTERMEDIATE, OUTPUT)
    prepared = prepare_ffn_params(params)   # one-time transpose + bf16 cast

    out = jax.block_until_ready(bert_feedforward(x, prepared))

    ref = _reference(x, params)
    assert out.shape == (B, T, OUTPUT)
    # Tolerance loosened vs. exact reference: bf16 MXU operands + tanh-approx
    # GELU + single-pass variance are small, intentional numeric deviations.
    assert jnp.allclose(out, ref, atol=5e-2, rtol=5e-2), float(
        jnp.max(jnp.abs(out - ref)))

    print("KERNEL_OK")
</pallas_src>

<mosaic_0001>
module attributes {stable_mosaic.version = 11 : i64} {
  func.func @_ffn_kernel(%arg0: i32, %arg1: memref<8x32xbf16, #tpu.memory_space<vmem>>, %arg2: memref<32x128xbf16, #tpu.memory_space<vmem>>, %arg3: memref<3x128xf32, #tpu.memory_space<vmem>>, %arg4: memref<128x32xbf16, #tpu.memory_space<vmem>>, %arg5: memref<1x32xf32, #tpu.memory_space<vmem>>, %arg6: memref<8x32xf32, #tpu.memory_space<vmem>>) attributes {dimension_semantics = [#tpu.dimension_semantics<parallel>], iteration_bounds = array<i64: 2>, scalar_prefetch = 0 : i64, scratch_operands = 0 : i64, tpu.core_type = #tpu.core_type<tc>, window_params = [{transform_indices = @transform_0, window_bounds = array<i64: 8, 32>}, {pipeline_mode = #tpu.pipeline_mode<synchronous>, transform_indices = @transform_1, window_bounds = array<i64: 32, 128>}, {pipeline_mode = #tpu.pipeline_mode<synchronous>, transform_indices = @transform_2, window_bounds = array<i64: 3, 128>}, {pipeline_mode = #tpu.pipeline_mode<synchronous>, transform_indices = @transform_3, window_bounds = array<i64: 128, 32>}, {pipeline_mode = #tpu.pipeline_mode<synchronous>, transform_indices = @transform_4, window_bounds = array<i64: 1, 32>}, {transform_indices = @transform_5, window_bounds = array<i64: 8, 32>}]} {
    %c0 = arith.constant 0 : index
    %c0_0 = arith.constant 0 : index
    %0 = vector.load %arg3[%c0, %c0_0] : memref<3x128xf32, #tpu.memory_space<vmem>>, vector<1x128xf32>
    %c1 = arith.constant 1 : index
    %c0_1 = arith.constant 0 : index
    %1 = vector.load %arg3[%c1, %c0_1] : memref<3x128xf32, #tpu.memory_space<vmem>>, vector<1x128xf32>
    %c2 = arith.constant 2 : index
    %c0_2 = arith.constant 0 : index
    %2 = vector.load %arg3[%c2, %c0_2] : memref<3x128xf32, #tpu.memory_space<vmem>>, vector<1x128xf32>
    %c0_3 = arith.constant 0 : index
    %c0_4 = arith.constant 0 : index
    %3 = vector.load %arg5[%c0_3, %c0_4] : memref<1x32xf32, #tpu.memory_space<vmem>>, vector<1x32xf32>
    %c0_5 = arith.constant 0 : index
    %c0_6 = arith.constant 0 : index
    %4 = vector.load %arg2[%c0_5, %c0_6] : memref<32x128xbf16, #tpu.memory_space<vmem>>, vector<32x128xbf16>
    %c0_7 = arith.constant 0 : index
    %c0_8 = arith.constant 0 : index
    %5 = vector.load %arg4[%c0_7, %c0_8] : memref<128x32xbf16, #tpu.memory_space<vmem>>, vector<128x32xbf16>
    %c0_9 = arith.constant 0 : index
    %c0_10 = arith.constant 0 : index
    %6 = vector.load %arg1[%c0_9, %c0_10] : memref<8x32xbf16, #tpu.memory_space<vmem>>, vector<8x32xbf16>
    %cst = arith.constant dense<0.000000e+00> : vector<8x128xf32>
    %7 = tpu.matmul %6, %4, %cst {dimension_numbers = #tpu.dot_dimension_numbers<[1], [0], [0], [1], [0, 0, 1, 1], [], []>} : vector<8x32xbf16>, vector<32x128xbf16>, vector<8x128xf32> -> vector<8x128xf32>
    %8 = vector.broadcast %0 : vector<1x128xf32> to vector<8x128xf32>
    %9 = arith.addf %7, %8 : vector<8x128xf32>
    %cst_11 = arith.constant 5.000000e-01 : f32
    %10 = vector.broadcast %cst_11 : f32 to vector<8x128xf32>
    %11 = arith.mulf %10, %9 : vector<8x128xf32>
    %12 = arith.mulf %9, %9 : vector<8x128xf32>
    %13 = arith.mulf %12, %9 : vector<8x128xf32>
    %cst_12 = arith.constant 4.471500e-02 : f32
    %14 = vector.broadcast %cst_12 : f32 to vector<8x128xf32>
    %15 = arith.mulf %14, %13 : vector<8x128xf32>
    %16 = arith.addf %9, %15 : vector<8x128xf32>
    %cst_13 = arith.constant 0.797884583 : f32
    %17 = vector.broadcast %cst_13 : f32 to vector<8x128xf32>
    %18 = arith.mulf %17, %16 : vector<8x128xf32>
    %19 = math.tanh %18 : vector<8x128xf32>
    %cst_14 = arith.constant 1.000000e+00 : f32
    %20 = vector.broadcast %cst_14 : f32 to vector<8x128xf32>
    %21 = arith.addf %20, %19 : vector<8x128xf32>
    %22 = arith.mulf %11, %21 : vector<8x128xf32>
    %cst_15 = arith.constant dense<0.000000e+00> : vector<8xf32>
    %23 = vector.multi_reduction <add>, %22, %cst_15 [1] : vector<8x128xf32> to vector<8xf32>
    %24 = vector.shape_cast %23 : vector<8xf32> to vector<8x1xf32>
    %cst_16 = arith.constant 1.280000e+02 : f32
    %25 = vector.broadcast %cst_16 : f32 to vector<8x1xf32>
    %26 = arith.divf %24, %25 : vector<8x1xf32>
    %27 = arith.mulf %22, %22 : vector<8x128xf32>
    %cst_17 = arith.constant dense<0.000000e+00> : vector<8xf32>
    %28 = vector.multi_reduction <add>, %27, %cst_17 [1] : vector<8x128xf32> to vector<8xf32>
    %29 = vector.shape_cast %28 : vector<8xf32> to vector<8x1xf32>
    %cst_18 = arith.constant 1.280000e+02 : f32
    %30 = vector.broadcast %cst_18 : f32 to vector<8x1xf32>
    %31 = arith.divf %29, %30 : vector<8x1xf32>
    %32 = arith.mulf %26, %26 : vector<8x1xf32>
    %33 = arith.subf %31, %32 : vector<8x1xf32>
    %cst_19 = arith.constant 0.000000e+00 : f32
    %34 = vector.broadcast %cst_19 : f32 to vector<8x1xf32>
    %35 = arith.maximumf %33, %34 : vector<8x1xf32>
    %cst_20 = arith.constant 9.99999996E-13 : f32
    %36 = vector.broadcast %cst_20 : f32 to vector<8x1xf32>
    %37 = arith.addf %35, %36 : vector<8x1xf32>
    %38 = math.rsqrt %37 : vector<8x1xf32>
    %39 = vector.broadcast %1 : vector<1x128xf32> to vector<8x128xf32>
    %40 = vector.broadcast %38 : vector<8x1xf32> to vector<8x128xf32>
    %41 = arith.mulf %39, %40 : vector<8x128xf32>
    %42 = arith.mulf %22, %41 : vector<8x128xf32>
    %43 = vector.broadcast %26 : vector<8x1xf32> to vector<8x128xf32>
    %44 = arith.mulf %43, %41 : vector<8x128xf32>
    %45 = vector.broadcast %2 : vector<1x128xf32> to vector<8x128xf32>
    %46 = arith.subf %45, %44 : vector<8x128xf32>
    %47 = arith.addf %42, %46 : vector<8x128xf32>
    %48 = arith.truncf %47 : vector<8x128xf32> to vector<8x128xbf16>
    %cst_21 = arith.constant dense<0.000000e+00> : vector<8x32xf32>
    %49 = tpu.matmul %48, %5, %cst_21 {dimension_numbers = #tpu.dot_dimension_numbers<[1], [0], [0], [1], [0, 0, 1, 1], [], []>} : vector<8x128xbf16>, vector<128x32xbf16>, vector<8x32xf32> -> vector<8x32xf32>
    %50 = vector.broadcast %3 : vector<1x32xf32> to vector<8x32xf32>
    %51 = arith.addf %49, %50 : vector<8x32xf32>
    %c0_22 = arith.constant 0 : index
    %c0_23 = arith.constant 0 : index
    %52 = vector.load %arg6[%c0_22, %c0_23] : memref<8x32xf32, #tpu.memory_space<vmem>>, vector<8x32xf32>
    tpu.vector_store %arg6[%c0_22, %c0_23], %51 {strides = array<i32>} : memref<8x32xf32, #tpu.memory_space<vmem>>, vector<8x32xf32>,
    return
  }
  func.func @transform_0(%arg0: i32) -> (i32, i32) {
    %c0_i32 = arith.constant 0 : i32
    %c0_i32_0 = arith.constant 0 : i32
    return %arg0, %c0_i32 : i32, i32
  }
  func.func @transform_1(%arg0: i32) -> (i32, i32) {
    %c0_i32 = arith.constant 0 : i32
    %c0_i32_0 = arith.constant 0 : i32
    %c0_i32_1 = arith.constant 0 : i32
    return %c0_i32, %c0_i32_0 : i32, i32
  }
  func.func @transform_2(%arg0: i32) -> (i32, i32) {
    %c0_i32 = arith.constant 0 : i32
    %c0_i32_0 = arith.constant 0 : i32
    %c0_i32_1 = arith.constant 0 : i32
    return %c0_i32, %c0_i32_0 : i32, i32
  }
  func.func @transform_3(%arg0: i32) -> (i32, i32) {
    %c0_i32 = arith.constant 0 : i32
    %c0_i32_0 = arith.constant 0 : i32
    %c0_i32_1 = arith.constant 0 : i32
    return %c0_i32, %c0_i32_0 : i32, i32
  }
  func.func @transform_4(%arg0: i32) -> (i32, i32) {
    %c0_i32 = arith.constant 0 : i32
    %c0_i32_0 = arith.constant 0 : i32
    %c0_i32_1 = arith.constant 0 : i32
    return %c0_i32, %c0_i32_0 : i32, i32
  }
  func.func @transform_5(%arg0: i32) -> (i32, i32) {
    %c0_i32 = arith.constant 0 : i32
    %c0_i32_0 = arith.constant 0 : i32
    return %arg0, %c0_i32 : i32, i32
  }
}

</mosaic_0001>

<llo_original>
// kernel: tpu_custom_call.1
$region0: #{tpu_custom_call.1}
  #allocation0 [shape = 'u32[]', space=smem, size = 0x4, offset = 0x4, fixed_abs, tag = 'smem constant byte address 0x4 - core index']
  #allocation1 [shape = 'u32[72,128]{1,0:T(1,128)}', space=vmem, size = 0x9000, scoped, tag = 'internal scratch']
  %s0 = inlined_call_operand.vmem [shape: bf16[16,32], index: 0, kind: input, shape index: {}]
  %s1 = inlined_call_operand.vmem [shape: bf16[32,128], index: 1, kind: input, shape index: {}]
  %s2 = inlined_call_operand.vmem [shape: f32[3,128], index: 2, kind: input, shape index: {}]
  %s3 = inlined_call_operand.vmem [shape: bf16[128,32], index: 3, kind: input, shape index: {}]
  %s4 = inlined_call_operand.vmem [shape: f32[1,32], index: 4, kind: input, shape index: {}]
  %s5 = inlined_call_operand.hbm [shape: f32[16,32], index: 5, kind: output, shape index: {}]
  %s6 = sld [smem:[#allocation0]]
  $region53: #{tpu_custom_call.1} parent=0
    _
  %s8 = ssub.s32 1, %s6
  %s9 = scalar_select 0, %s8, %s6
  $region1: #{tpu_custom_call.1} parent=0
    #allocation2 [shape = 'u8[8192]{0}', space=vmem, size = 0x2000, scoped, tag = 'output window, operand 0']
    #allocation3 [shape = 's32[2]{0}', space=sflag, size = 0x8, scoped, tag = 'scoped memory for tpu_custom_call.1']
    %10 = vsyncpa [#allocation3], 0
    %s11 = scalar_lea.sflag [#allocation3], 1
    %12 = vsyncpa %s11, 0
    loop: start=0, step=1, limit=4
    $region2: #{tpu_custom_call.1} parent=1 // loop_pre_header
      _
    $region3: #{tpu_custom_call.1} parent=1 // loop_header
      %s14 = sphi 0, %s18
      %p15 = scmp.ge.s32.totalorder %s14, 4
      %s24 = sphi 0, %s26
      %s27 = sphi 0, %s24
      %s28 = sphi 0, %s27
      %s44 = sphi 0, %s28
      %s48 = sphi 0, %s48
      %s50 = sphi 0, %s48
      %s51 = sphi 0, %s50
      %s65 = sphi 0, %s51
      %s69 = sphi 0, %s69
      %s71 = sphi 0, %s69
      %s72 = sphi 0, %s71
      %s86 = sphi 0, %s72
      %s90 = sphi 0, %s90
      %s92 = sphi 0, %s90
      %s93 = sphi 0, %s92
      %s107 = sphi 0, %s93
      %s111 = sphi 0, %s111
      %s113 = sphi 0, %s111
      %s114 = sphi 0, %s113
      %s128 = sphi 0, %s114
      %s134 = sphi 0, %s136
      %s137 = sphi 0, %s134
      %s138 = sphi 0, %s137
      %s154 = sphi 0, %s138
    $region4: #{tpu_custom_call.1} parent=1 // loop_header_branch
      %17 = sbr.rel (%p15) target = $region8
    $region5: #{tpu_custom_call.1} parent=1 // loop_body
      %s19 = ssub.s32 %s14, 1
      %s20 = ssub.s32 %s14, 2
      %s21 = sadd.s32 %s14, 1
      %s22 = ssub.s32 %s14, %s21
      %p23 = scmp.eq.s32.totalorder %s22, 0
      %s25 = sadd.s32 %s24, 1
      %s26 = scalar_select %p23, %s24, %s25
      %p29 = pneg %p23
      %p30 = scmp.eq.s32.totalorder %s14, 1
      %p31 = por %p29, %p30
      %p32 = scmp.ne.s32.totalorder %s24, %s27
      %p33 = scmp.eq.s32.totalorder %s14, 0
      %p34 = por %p32, %p33
      %p35 = scmp.ne.s32.totalorder %s24, %s27
      %p36 = scmp.eq.s32.totalorder %s19, 1
      %p37 = por %p35, %p36
      %p38 = scmp.ne.s32.totalorder %s27, %s28
      %p39 = scmp.eq.s32.totalorder %s19, 0
      %p40 = por %p38, %p39
      %p41 = scmp.ne.s32.totalorder %s27, %s28
      %p42 = scmp.eq.s32.totalorder %s20, 1
      %p43 = por %p41, %p42
      %p45 = scmp.ne.s32.totalorder %s28, %s44
      %p46 = scmp.eq.s32.totalorder %s20, 0
      %p47 = por %p45, %p46
      %s49 = sadd.s32 %s48, 1
      %p52 = scmp.eq.s32.totalorder %s14, 1
      %p53 = scmp.ne.s32.totalorder %s48, %s50
      %p54 = scmp.eq.s32.totalorder %s14, 0
      %p55 = por %p53, %p54
      %p56 = scmp.ne.s32.totalorder %s48, %s50
      %p57 = scmp.eq.s32.totalorder %s19, 1
      %p58 = por %p56, %p57
      %p59 = scmp.ne.s32.totalorder %s50, %s51
      %p60 = scmp.eq.s32.totalorder %s19, 0
      %p61 = por %p59, %p60
      %p62 = scmp.ne.s32.totalorder %s50, %s51
      %p63 = scmp.eq.s32.totalorder %s20, 1
      %p64 = por %p62, %p63
      %p66 = scmp.ne.s32.totalorder %s51, %s65
      %p67 = scmp.eq.s32.totalorder %s20, 0
      %p68 = por %p66, %p67
      %s70 = sadd.s32 %s69, 1
      %p73 = scmp.eq.s32.totalorder %s14, 1
      %p74 = scmp.ne.s32.totalorder %s69, %s71
      %p75 = scmp.eq.s32.totalorder %s14, 0
      %p76 = por %p74, %p75
      %p77 = scmp.ne.s32.totalorder %s69, %s71
      %p78 = scmp.eq.s32.totalorder %s19, 1
      %p79 = por %p77, %p78
      %p80 = scmp.ne.s32.totalorder %s71, %s72
      %p81 = scmp.eq.s32.totalorder %s19, 0
      %p82 = por %p80, %p81
      %p83 = scmp.ne.s32.totalorder %s71, %s72
      %p84 = scmp.eq.s32.totalorder %s20, 1
      %p85 = por %p83, %p84
      %p87 = scmp.ne.s32.totalorder %s72, %s86
      %p88 = scmp.eq.s32.totalorder %s20, 0
      %p89 = por %p87, %p88
      %s91 = sadd.s32 %s90, 1
      %p94 = scmp.eq.s32.totalorder %s14, 1
      %p95 = scmp.ne.s32.totalorder %s90, %s92
      %p96 = scmp.eq.s32.totalorder %s14, 0
      %p97 = por %p95, %p96
      %p98 = scmp.ne.s32.totalorder %s90, %s92
      %p99 = scmp.eq.s32.totalorder %s19, 1
      %p100 = por %p98, %p99
      %p101 = scmp.ne.s32.totalorder %s92, %s93
      %p102 = scmp.eq.s32.totalorder %s19, 0
      %p103 = por %p101, %p102
      %p104 = scmp.ne.s32.totalorder %s92, %s93
      %p105 = scmp.eq.s32.totalorder %s20, 1
      %p106 = por %p104, %p105
      %p108 = scmp.ne.s32.totalorder %s93, %s107
      %p109 = scmp.eq.s32.totalorder %s20, 0
      %p110 = por %p108, %p109
      %s112 = sadd.s32 %s111, 1
      %p115 = scmp.eq.s32.totalorder %s14, 1
      %p116 = scmp.ne.s32.totalorder %s111, %s113
      %p117 = scmp.eq.s32.totalorder %s14, 0
      %p118 = por %p116, %p117
      %p119 = scmp.ne.s32.totalorder %s111, %s113
      %p120 = scmp.eq.s32.totalorder %s19, 1
      %p121 = por %p119, %p120
      %p122 = scmp.ne.s32.totalorder %s113, %s114
      %p123 = scmp.eq.s32.totalorder %s19, 0
      %p124 = por %p122, %p123
      %p125 = scmp.ne.s32.totalorder %s113, %s114
      %p126 = scmp.eq.s32.totalorder %s20, 1
      %p127 = por %p125, %p126
      %p129 = scmp.ne.s32.totalorder %s114, %s128
      %p130 = scmp.eq.s32.totalorder %s20, 0
      %p131 = por %p129, %p130
      %s132 = ssub.s32 %s14, %s21
      %p133 = scmp.eq.s32.totalorder %s132, 0
      %s135 = sadd.s32 %s134, 1
      %s136 = scalar_select %p133, %s134, %s135
      %p139 = pneg %p133
      %p140 = scmp.eq.s32.totalorder %s14, 1
      %p141 = por %p139, %p140
      %p142 = scmp.ne.s32.totalorder %s134, %s137
      %p143 = scmp.eq.s32.totalorder %s14, 0
      %p144 = por %p142, %p143
      %p145 = scmp.ne.s32.totalorder %s134, %s137
      %p146 = scmp.eq.s32.totalorder %s19, 1
      %p147 = por %p145, %p146
      %p148 = scmp.ne.s32.totalorder %s137, %s138
      %p149 = scmp.eq.s32.totalorder %s19, 0
      %p150 = por %p148, %p149
      %p151 = scmp.ne.s32.totalorder %s137, %s138
      %p152 = scmp.eq.s32.totalorder %s20, 1
      %p153 = por %p151, %p152
      %p155 = scmp.ne.s32.totalorder %s138, %s154
      %p156 = scmp.eq.s32.totalorder %s20, 0
      %p157 = por %p155, %p156
      %p158 = scmp.le.s32.totalorder 1, %s14
      %p159 = scmp.lt.s32.totalorder %s14, 3
      %p160 = pnand %p158, %p159
      %p161 = pneg %p160
      // Predicated region
      $region9: #{tpu_custom_call.1} parent=5 // pred_check
        _
      $region10: #{tpu_custom_call.1} parent=5 // pred_check_branch
        %163 = sbr.rel (%p160) target = $region12
      $region11: #{tpu_custom_call.1} parent=5 // pred_region
        %s164 = ssub.s32 %s14, 1
        // Predicated region
        $region13: #{tpu_custom_call.1} parent=11 // pred_check
          %p165 = pneg %p61
        $region14: #{tpu_custom_call.1} parent=11 // pred_check_branch
          %167 = sbr.rel (%p165) target = $region16
        $region15: #{tpu_custom_call.1} parent=11 // pred_region
          _
        $region16: #{tpu_custom_call.1} parent=11 // pred_fallthru
          _
        // Predicated region
        $region17: #{tpu_custom_call.1} parent=11 // pred_check
          %p168 = pneg %p82
        $region18: #{tpu_custom_call.1} parent=11 // pred_check_branch
          %170 = sbr.rel (%p168) target = $region20
        $region19: #{tpu_custom_call.1} parent=11 // pred_region
          _
        $region20: #{tpu_custom_call.1} parent=11 // pred_fallthru
          _
        // Predicated region
        $region21: #{tpu_custom_call.1} parent=11 // pred_check
          %p171 = pneg %p103
        $region22: #{tpu_custom_call.1} parent=11 // pred_check_branch
          %173 = sbr.rel (%p171) target = $region24
        $region23: #{tpu_custom_call.1} parent=11 // pred_region
          _
        $region24: #{tpu_custom_call.1} parent=11 // pred_fallthru
          _
        // Predicated region
        $region25: #{tpu_custom_call.1} parent=11 // pred_check
          %p174 = pneg %p124
        $region26: #{tpu_custom_call.1} parent=11 // pred_check_branch
          %176 = sbr.rel (%p174) target = $region28
        $region27: #{tpu_custom_call.1} parent=11 // pred_region
          _
        $region28: #{tpu_custom_call.1} parent=11 // pred_fallthru
          _
      $region12: #{tpu_custom_call.1} parent=5 // pred_fallthru
        _
      %p177 = scmp.lt.s32.totalorder %s14, 2
      // Predicated region
      $region29: #{tpu_custom_call.1} parent=5 // pred_check
        %p178 = pneg %p177
      $region30: #{tpu_custom_call.1} parent=5 // pred_check_branch
        %180 = sbr.rel (%p178) target = $region32
      $region31: #{tpu_custom_call.1} parent=5 // pred_region
        // Predicated region
        $region33: #{tpu_custom_call.1} parent=31 // pred_check
          %p181 = pneg %p34
        $region34: #{tpu_custom_call.1} parent=31 // pred_check_branch
          %183 = sbr.rel (%p181) target = $region36
        $region35: #{tpu_custom_call.1} parent=31 // pred_region
          %p184 = scmp.lt.s32.totalorder %s14, 1
          %s185 = scalar_select %p184, %s14, 1
          %s186 = smul.addr %s185, 4
          %s187 = scalar_lea.vmem %s0, %s186
        $region36: #{tpu_custom_call.1} parent=31 // pred_fallthru
          _
      $region32: #{tpu_custom_call.1} parent=5 // pred_fallthru
        _
      %p188 = scmp.le.s32.totalorder 1, %s14
      %p189 = scmp.lt.s32.totalorder %s14, 3
      %p190 = pnand %p188, %p189
      %p191 = pneg %p190
      // Predicated region
      $region37: #{tpu_custom_call.1} parent=5 // pred_check
        _
      $region38: #{tpu_custom_call.1} parent=5 // pred_check_branch
        %193 = sbr.rel (%p190) target = $region40
      $region39: #{tpu_custom_call.1} parent=5 // pred_region
        %s194 = ssub.s32 %s14, 1
        %p195 = scmp.lt.s32.totalorder %s19, 1
        %s196 = scalar_select %p195, %s19, 1
        %s197 = smul.addr %s196, 4
        %s198 = scalar_lea.vmem %s0, %s197
        %p199 = pneg %p40
        %p200 = pneg %p37
        %p201 = pneg %p61
        %p202 = pneg %p58
        %p203 = pneg %p82
        %p204 = pneg %p79
        %p205 = pneg %p103
        %p206 = pneg %p100
        %p207 = pneg %p124
        %p208 = pneg %p121
        %p209 = pneg %p150
        %p210 = pneg %p147
        %s211 = sand.u32 %s137, 1
        %s212 = scalar_lea.sflag [#allocation3], %s211
        %s213 = sand.u32 %s137, 1
        %s214 = smul.addr %s213, 8
        %s215 = scalar_lea.vmem [#allocation2], %s214
        %p216 = scmp.lt.s32.totalorder %s19, 1
        %s217 = scalar_select %p216, %s19, 1
        %s218 = smul.addr %s217, 4
        %s219 = scalar_lea.vmem %s0, %s218
        %v221 = vld [vmem:[%s2] sm:$0x1]
        %v222 = vld [vmem:[%s2 + $0x1] sm:$0x1]
        %v223 = vld [vmem:[%s2 + $0x2] sm:$0x1]
        %v224 = vld [vmem:[%s4] sm:$0x1]
        %v225 = vld [vmem:[%s1] sm:$0xf]
        %v226 = vld [vmem:[%s1 + $0x4] sm:$0xf]
        %v227 = vld [vmem:[%s1 + $0x8] sm:$0xf]
        %v228 = vld [vmem:[%s1 + $0xc] sm:$0xf]
        %v229 = vld [vmem:[%s3] sm:$0xf]
        %v230 = vld [vmem:[%s3 + $0x4] sm:$0xf]
        %v231 = vld [vmem:[%s3 + $0x8] sm:$0xf]
        %v232 = vld [vmem:[%s3 + $0xc] sm:$0xf]
        %v233 = vld [vmem:[%s3 + $0x10] sm:$0xf]
        %v234 = vld [vmem:[%s3 + $0x14] sm:$0xf]
        %v235 = vld [vmem:[%s3 + $0x18] sm:$0xf]
        %v236 = vld [vmem:[%s3 + $0x1c] sm:$0xf]
        %v237 = vld [vmem:[%s3 + $0x20] sm:$0xf]
        %v238 = vld [vmem:[%s3 + $0x24] sm:$0xf]
        %v239 = vld [vmem:[%s3 + $0x28] sm:$0xf]
        %v240 = vld [vmem:[%s3 + $0x2c] sm:$0xf]
        %v241 = vld [vmem:[%s3 + $0x30] sm:$0xf]
        %v242 = vld [vmem:[%s3 + $0x34] sm:$0xf]
        %v243 = vld [vmem:[%s3 + $0x38] sm:$0xf]
        %v244 = vld [vmem:[%s3 + $0x3c] sm:$0xf]
        %v245 = vld [vmem:[%s219] sm:$0xf]
        %v246 = vperm.slane %v221, 0
        %v251 = vunpack.c.l.b16 %v225
        %v252 = vunpack.c.l.b16 %v226
        %v253 = vunpack.c.l.b16 %v227
        %v254 = vunpack.c.l.b16 %v228
        %v255 = vpack.c.b16 %v252, %v251
        %v256 = vpack.c.b16 %v254, %v253
        %vm259 = vcmask 261120
        %v261 = vsel %vm259, %v245, 0
        %263 = vmatpush.bf16.msra.mxu0 0
        %264 = vmatpush.bf16.msra.mxu0 0
        %265 = vmatpush.bf16.msra.mxu0 0
        %266 = vmatpush.bf16.msra.mxu0 0
        %267 = vmatpush.bf16.msra.mxu0 0
        %268 = vmatpush.bf16.msra.mxu0 0
        %269 = vmatpush.bf16.msra.mxu0 %v256
        %270 = vmatpush.bf16.msra.mxu0 %v255
        %271 = vmatmul.bf16.gmra.mxu0 %v261
        %v272 = vpop.f32.mrf.mxu0
        %v273 = vadd.f32 %v246, %v272
        %v274 = vpop.f32.mrf.mxu0
        %275 = vdwg.mxu0
        %v276 = vmul.f32 %v273, 0.5
        %v277 = vmul.f32 %v273, %v273
        %v278 = vmul.f32 %v277, %v273
        %v279 = vmul.f32 %v278, 0.044715
        %v280 = vadd.f32 %v273, %v279
        %v281 = vmul.f32 %v280, 0.7978846
        %v282 = vtanh.pop %v281
        %v283 = vadd.f32 %v282, 1.0
        %v284 = vmul.f32 %v276, %v283
        %285 = vadd.xlane.f32.xlu0 %v284
        %v286 = vpop.xlane.xlu0 %285
        %v287 = vrcp.pop 128.0
        %v288 = vmul.f32 128.0, %v287
        %v289 = vsub.f32 1.0, %v288
        %v290 = vmul.f32 %v287, %v289
        %v291 = vadd.f32 %v287, %v290
        %vm292 = vweird.f32 %v287
        %v293 = vsel %vm292, %v287, %v291
        %v294 = vmul.f32 %v286, %v293
        %v295 = vmul.f32 %v284, %v284
        %296 = vadd.xlane.f32.xlu0 %v295
        %v297 = vpop.xlane.xlu0 %296
        %v298 = vmul.f32 %v297, %v293
        %v299 = vmul.f32 %v294, %v294
        %v300 = vsub.f32 %v298, %v299
        %v301 = vmax.f32 %v300, 0.0
        %v302 = vadd.f32 %v301, 1e-12
        %v303 = vrsqrt.pop %v302
        %v304 = vmul.f32 %v303, %v302
        %v305 = vmul.f32 %v304, %v303
        %v306 = vmul.f32 0.5, %v305
        %v307 = vsub.f32 1.5, %v306
        %v308 = vmul.f32 %v303, %v307
        %vm309 = vweird.f32 %v302
        %vm310 = vweird.f32 %v303
        %vm311 = vmor %vm309, %vm310
        %v312 = vsel %vm311, %v303, %v308
        %v313 = vperm.slane %v222, 0
        %v314 = vmul.f32 %v313, %v312
        %v315 = vmul.f32 %v284, %v314
        %v316 = vmul.f32 %v294, %v314
        %v317 = vperm.slane %v223, 0
        %v318 = vsub.f32 %v317, %v316
        %v319 = vadd.f32 %v315, %v318
        %v320 = vpack.c.bf16 %v319, %v319
        %v322 = vperm.slane %v224, 0
        %v340 = vunpack.c.l.b16 %v229
        %v341 = vunpack.c.l.b16 %v230
        %v342 = vunpack.c.l.b16 %v231
        %v343 = vunpack.c.l.b16 %v232
        %v344 = vunpack.c.l.b16 %v233
        %v345 = vunpack.c.l.b16 %v234
        %v346 = vunpack.c.l.b16 %v235
        %v347 = vunpack.c.l.b16 %v236
        %v348 = vunpack.c.l.b16 %v237
        %v349 = vunpack.c.l.b16 %v238
        %v350 = vunpack.c.l.b16 %v239
        %v351 = vunpack.c.l.b16 %v240
        %v352 = vunpack.c.l.b16 %v241
        %v353 = vunpack.c.l.b16 %v242
        %v354 = vunpack.c.l.b16 %v243
        %v355 = vunpack.c.l.b16 %v244
        %v356 = vpack.c.b16 %v341, %v340
        %v357 = vpack.c.b16 %v343, %v342
        %v358 = vpack.c.b16 %v345, %v344
        %v359 = vpack.c.b16 %v347, %v346
        %v360 = vpack.c.b16 %v349, %v348
        %v361 = vpack.c.b16 %v351, %v350
        %v362 = vpack.c.b16 %v353, %v352
        %v363 = vpack.c.b16 %v355, %v354
        %372 = vmatpush.bf16.msra.mxu0 %v363
        %373 = vmatpush.bf16.msra.mxu0 %v362
        %374 = vmatpush.bf16.msra.mxu0 %v361
        %375 = vmatpush.bf16.msra.mxu0 %v360
        %376 = vmatpush.bf16.msra.mxu0 %v359
        %377 = vmatpush.bf16.msra.mxu0 %v358
        %378 = vmatpush.bf16.msra.mxu0 %v357
        %379 = vmatpush.bf16.msra.mxu0 %v356
        %380 = vmatmul.bf16.gmra.mxu0 %v320
        %v381 = vpop.f32.mrf.mxu0
        %v382 = vadd.f32 %v322, %v381
        %v383 = vpop.f32.mrf.mxu0
        %384 = vdwg.mxu0
        %385 = vst.msk [vmem:[%s215] sm:$0xff] %vm259, %v382
        %s386 = sand.u32 %s137, 1
        %s387 = scalar_lea.sflag [#allocation3], %s386
        %s388 = sand.u32 %s137, 1
        %s389 = smul.addr %s388, 8
        %s390 = scalar_lea.vmem [#allocation2], %s389
        // Predicated region
        $region41: #{tpu_custom_call.1} parent=39 // pred_check
          %p391 = pneg %p147
        $region42: #{tpu_custom_call.1} parent=39 // pred_check_branch
          %393 = sbr.rel (%p391) target = $region44
        $region43: #{tpu_custom_call.1} parent=39 // pred_region
          %395 = vsyncadd %s387, 0
          %s396 = smul.addr %s19, 8
          %s397 = scalar_lea.hbm %s5, %s396
          %s399 = sshll.u32 %s390, 4
          %s400 = int_to_ptr.vmem [resolvable:$true] %s399
          %s401 = sshll.u32 %s397, 4
          %s402 = int_to_ptr.hbm [resolvable:$true] %s401
          %404 = dma.vmem_to_hbm [thread:$0]  %s400, 128, %s402, %s387
        $region44: #{tpu_custom_call.1} parent=39 // pred_fallthru
          _
      $region40: #{tpu_custom_call.1} parent=5 // pred_fallthru
        _
      %p405 = scmp.le.s32.totalorder 2, %s14
      // Predicated region
      $region45: #{tpu_custom_call.1} parent=5 // pred_check
        %p406 = pneg %p405
      $region46: #{tpu_custom_call.1} parent=5 // pred_check_branch
        %408 = sbr.rel (%p406) target = $region48
      $region47: #{tpu_custom_call.1} parent=5 // pred_region
        %s409 = ssub.s32 %s14, 2
        // Predicated region
        $region49: #{tpu_custom_call.1} parent=47 // pred_check
          %p410 = pneg %p153
        $region50: #{tpu_custom_call.1} parent=47 // pred_check_branch
          %412 = sbr.rel (%p410) target = $region52
        $region51: #{tpu_custom_call.1} parent=47 // pred_region
          %s413 = sand.u32 %s138, 1
          %s414 = scalar_lea.sflag [#allocation3], %s413
          %s415 = sand.u32 %s138, 1
          %s416 = smul.addr %s415, 8
          %s417 = scalar_lea.vmem [#allocation2], %s416
          %419 = dma.done %s414, 128
        $region52: #{tpu_custom_call.1} parent=47 // pred_fallthru
          _
      $region48: #{tpu_custom_call.1} parent=5 // pred_fallthru
        _
    $region6: #{tpu_custom_call.1} parent=1 // loop_footer
      %s18 = sadd.s32 1, %s14
    $region7: #{tpu_custom_call.1} parent=1 // loop_footer_branch
      %13 = sbr.rel target = $region3
    $region8: #{tpu_custom_call.1} parent=1 // loop_exit
      _
    %420 = vsyncpa [#allocation3], 1
    %s421 = scalar_lea.sflag [#allocation3], 1
    %422 = vsyncpa %s421, 1

</llo_original>
